<compile_context>
chip_gen: v7x
topology: tpu7x:2x2x1
jax: 0.10.0
libtpu: 0.0.40
codegen_flags: <defaults>
</compile_context>

<pallas_src>
import functools

import jax
import jax.numpy as jnp
from jax.experimental import pallas as pl
from jax.experimental.pallas import tpu as pltpu


def _round_up(x, m):
    return (x + m - 1) // m * m


def _fused_mlp_kernel(*refs, n_layers):
    """refs = (x_ref, w0, b0, w1, b1, ..., w_{L-1}, b_{L-1}, o_ref).

    x_ref: (tb, in_f) bf16, w_l: (in_pad_l, out_pad_l) bf16 (pre-transposed),
    b_l: (1, out_pad_l) f32, o_ref: (tb, out_pad) f32.
    """
    x_ref = refs[0]
    o_ref = refs[-1]
    h = x_ref[...]                                   # bf16 activations in
    for l in range(n_layers):
        w = refs[1 + 2 * l][...]                     # (in_pad, out_pad) bf16
        b = refs[2 + 2 * l][...]                     # (1, out_pad)      f32
        # MXU: bf16 x bf16 with f32 accumulation; epilogue (bias+ReLU) in f32.
        y = jnp.dot(h.astype(w.dtype), w, preferred_element_type=jnp.float32)
        h = y + b
        if l < n_layers - 1:                         # hidden layers only
            h = jnp.maximum(h, 0.0)
    o_ref[...] = h.astype(o_ref.dtype)


def init_params(layer_sizes, key):
    """Deterministic init matching PyTorch Linear shapes:
    weight (out, in), bias (out,), uniform(-1/sqrt(in), 1/sqrt(in))."""
    params = []
    for n_in, n_out in zip(layer_sizes[:-1], layer_sizes[1:]):
        key, kw, kb = jax.random.split(key, 3)
        bound = 1.0 / jnp.sqrt(jnp.float32(n_in))
        w = jax.random.uniform(kw, (n_out, n_in), jnp.float32, -bound, bound)
        b = jax.random.uniform(kb, (n_out,), jnp.float32, -bound, bound)
        params.append((w, b))
    return params


def prepare_params(params, *, weight_dtype=jnp.bfloat16, lane=128):
    """One-time packing of PyTorch-convention params for the fused kernel:
    transpose weights to (in_f, out_f), cast to bf16, keep biases f32 as
    (1, out_f), and zero-pad EVERY layer's output width to a multiple of 128
    lanes (the next layer's input rows are zero-padded to match).  Padded
    units are exact zeros, so results are bit-identical for real outputs."""
    packed = []
    in_pad_extra = 0                                  # zero rows to append
    for w, b in params:
        out_f, _ = w.shape
        wt = w.T.astype(weight_dtype)                 # (in_f, out_f)
        b2 = b.reshape(1, out_f).astype(jnp.float32)
        if in_pad_extra:
            wt = jnp.pad(wt, ((0, in_pad_extra), (0, 0)))
        out_pad = _round_up(out_f, lane)
        if out_pad != out_f:
            wt = jnp.pad(wt, ((0, 0), (0, out_pad - out_f)))
            b2 = jnp.pad(b2, ((0, 0), (0, out_pad - out_f)))
        in_pad_extra = out_pad - out_f
        packed.append((wt, b2))
    num_classes = params[-1][0].shape[0]
    return packed, num_classes


def _pick_batch_tile(B, batch_tile):
    if B <= 256:
        return B                      # single full-extent tile, grid = 1
    # >= 2 grid steps so v7x's two TensorCores both get work; tiles are
    # multiples of 8 sublanes, capped at batch_tile for VMEM.
    return min(batch_tile, _round_up(pl.cdiv(B, 2), 8))


def nn_fc_forward(x_nchw, packed_params, num_classes, *, batch_tile=512):
    """Forward pass of NN_FC_CrossEntropy (returns logits, shape (B, C))."""
    B = x_nchw.shape[0]
    # nn.Flatten(); cast to bf16 here: the kernel rounds activations to bf16
    # before every matmul anyway, so this is numerically identical and halves
    # the dominant HBM stream (the x read).
    x = x_nchw.reshape(B, -1).astype(jnp.bfloat16)
    in_f = x.shape[1]
    n_layers = len(packed_params)
    out_pad = packed_params[-1][0].shape[1]

    # ---- batch tile sizing against an explicit VMEM budget -----------------
    tb = _pick_batch_tile(B, batch_tile)
    w_bytes = sum(int(w.size) * w.dtype.itemsize + int(b.size) * b.dtype.itemsize
                  for w, b in packed_params)

    def vmem_need(t):
        return (2 * t * in_f * 2          # double-buffered bf16 x tile
                + 2 * t * out_pad * 4     # double-buffered f32 logits tile
                + w_bytes)                # weights/biases, single-buffered

    budget = 20 * 1024 * 1024             # well under v7x's 32 MiB scoped VMEM
    while tb > 8 and vmem_need(tb) > budget:
        tb = max(8, (tb // 2) // 8 * 8)
    vmem_limit = int(min(32 * 1024 * 1024,
                         max(16 * 1024 * 1024, 2 * vmem_need(tb))))

    grid = (pl.cdiv(B, tb),)              # partial last block: OOB stores are
                                          # masked; rows are independent.

    in_specs = [pl.BlockSpec((tb, in_f), lambda i: (i, 0))]
    flat_wb = []
    for w, b in packed_params:
        # Constant-index blocks: fetched once, no double buffer needed.
        in_specs.append(pl.BlockSpec(w.shape, lambda i: (0, 0),
                                     pipeline_mode=pl.Buffered(1)))
        in_specs.append(pl.BlockSpec(b.shape, lambda i: (0, 0),
                                     pipeline_mode=pl.Buffered(1)))
        flat_wb.extend((w, b))

    kernel = functools.partial(_fused_mlp_kernel, n_layers=n_layers)

    out = pl.pallas_call(
        kernel,
        out_shape=jax.ShapeDtypeStruct((B, out_pad), jnp.float32),
        grid=grid,
        in_specs=in_specs,
        out_specs=pl.BlockSpec((tb, out_pad), lambda i: (i, 0)),
        compiler_params=pltpu.CompilerParams(
            dimension_semantics=("parallel",),
            vmem_limit_bytes=vmem_limit,
        ),
    )(x, *flat_wb)

    # Padded class columns are exactly 0.0; that is safe ONLY because we slice
    # them off here (they'd need -inf masking if a softmax were fused later).
    return out[:, :num_classes]


if __name__ == "__main__":
    key = jax.random.PRNGKey(0)
    key, kx = jax.random.split(key)

    # Small shapes: input image (B=2, C=4, H=16, W=16) -> 1024 flattened feats
    x = jax.random.normal(kx, (2, 4, 16, 16), jnp.float32)

    # layer_sizes as in the PyTorch module's __init__
    layer_sizes = [4 * 16 * 16, 128, 64, 10]
    params = init_params(layer_sizes, key)

    packed, num_classes = prepare_params(params)
    out = nn_fc_forward(x, packed, num_classes)
    jax.block_until_ready(out)

    # Pure-JAX reference using the SAME bf16-rounded operands the kernel sees
    # (x and per-layer activations rounded to bf16 before each matmul, weights
    #  bf16, accumulation / bias / ReLU in f32).
    h = x.reshape(x.shape[0], -1)
    for idx, (w, b) in enumerate(params):
        w_bf = w.astype(jnp.bfloat16).astype(jnp.float32)
        h_bf = h.astype(jnp.bfloat16).astype(jnp.float32)
        h = h_bf @ w_bf.T + b
        if idx < len(params) - 1:
            h = jnp.maximum(h, 0.0)

    assert out.shape == (2, 10)
    assert jnp.allclose(out, h, atol=2e-3, rtol=2e-3), float(
        jnp.max(jnp.abs(out - h))
    )

    print("KERNEL_OK")
</pallas_src>

<mosaic_0001>
module attributes {stable_mosaic.version = 11 : i64} {
  func.func @_fused_mlp_kernel(%arg0: i32, %arg1: memref<2x1024xbf16, #tpu.memory_space<vmem>>, %arg2: memref<1024x128xbf16, #tpu.memory_space<vmem>>, %arg3: memref<1x128xf32, #tpu.memory_space<vmem>>, %arg4: memref<128x128xbf16, #tpu.memory_space<vmem>>, %arg5: memref<1x128xf32, #tpu.memory_space<vmem>>, %arg6: memref<128x128xbf16, #tpu.memory_space<vmem>>, %arg7: memref<1x128xf32, #tpu.memory_space<vmem>>, %arg8: memref<2x128xf32, #tpu.memory_space<vmem>>) attributes {dimension_semantics = [#tpu.dimension_semantics<parallel>], iteration_bounds = array<i64: 1>, scalar_prefetch = 0 : i64, scratch_operands = 0 : i64, tpu.core_type = #tpu.core_type<tc>, window_params = [{transform_indices = @transform_0, window_bounds = array<i64: 2, 1024>}, {pipeline_mode = #tpu.pipeline_mode<synchronous>, transform_indices = @transform_1, window_bounds = array<i64: 1024, 128>}, {pipeline_mode = #tpu.pipeline_mode<synchronous>, transform_indices = @transform_2, window_bounds = array<i64: 1, 128>}, {pipeline_mode = #tpu.pipeline_mode<synchronous>, transform_indices = @transform_3, window_bounds = array<i64: 128, 128>}, {pipeline_mode = #tpu.pipeline_mode<synchronous>, transform_indices = @transform_4, window_bounds = array<i64: 1, 128>}, {pipeline_mode = #tpu.pipeline_mode<synchronous>, transform_indices = @transform_5, window_bounds = array<i64: 128, 128>}, {pipeline_mode = #tpu.pipeline_mode<synchronous>, transform_indices = @transform_6, window_bounds = array<i64: 1, 128>}, {transform_indices = @transform_7, window_bounds = array<i64: 2, 128>}]} {
    %c0 = arith.constant 0 : index
    %c0_0 = arith.constant 0 : index
    %0 = vector.load %arg1[%c0, %c0_0] : memref<2x1024xbf16, #tpu.memory_space<vmem>>, vector<2x1024xbf16>
    %c0_1 = arith.constant 0 : index
    %c0_2 = arith.constant 0 : index
    %1 = vector.load %arg2[%c0_1, %c0_2] : memref<1024x128xbf16, #tpu.memory_space<vmem>>, vector<1024x128xbf16>
    %c0_3 = arith.constant 0 : index
    %c0_4 = arith.constant 0 : index
    %2 = vector.load %arg3[%c0_3, %c0_4] : memref<1x128xf32, #tpu.memory_space<vmem>>, vector<1x128xf32>
    %cst = arith.constant dense<0.000000e+00> : vector<2x128xf32>
    %3 = tpu.matmul %0, %1, %cst {dimension_numbers = #tpu.dot_dimension_numbers<[1], [0], [0], [1], [0, 0, 1, 1], [], []>} : vector<2x1024xbf16>, vector<1024x128xbf16>, vector<2x128xf32> -> vector<2x128xf32>
    %4 = vector.broadcast %2 : vector<1x128xf32> to vector<2x128xf32>
    %5 = arith.addf %3, %4 : vector<2x128xf32>
    %cst_5 = arith.constant 0.000000e+00 : f32
    %6 = vector.broadcast %cst_5 : f32 to vector<2x128xf32>
    %7 = arith.maximumf %5, %6 : vector<2x128xf32>
    %c0_6 = arith.constant 0 : index
    %c0_7 = arith.constant 0 : index
    %8 = vector.load %arg4[%c0_6, %c0_7] : memref<128x128xbf16, #tpu.memory_space<vmem>>, vector<128x128xbf16>
    %c0_8 = arith.constant 0 : index
    %c0_9 = arith.constant 0 : index
    %9 = vector.load %arg5[%c0_8, %c0_9] : memref<1x128xf32, #tpu.memory_space<vmem>>, vector<1x128xf32>
    %10 = arith.truncf %7 : vector<2x128xf32> to vector<2x128xbf16>
    %cst_10 = arith.constant dense<0.000000e+00> : vector<2x128xf32>
    %11 = tpu.matmul %10, %8, %cst_10 {dimension_numbers = #tpu.dot_dimension_numbers<[1], [0], [0], [1], [0, 0, 1, 1], [], []>} : vector<2x128xbf16>, vector<128x128xbf16>, vector<2x128xf32> -> vector<2x128xf32>
    %12 = vector.broadcast %9 : vector<1x128xf32> to vector<2x128xf32>
    %13 = arith.addf %11, %12 : vector<2x128xf32>
    %cst_11 = arith.constant 0.000000e+00 : f32
    %14 = vector.broadcast %cst_11 : f32 to vector<2x128xf32>
    %15 = arith.maximumf %13, %14 : vector<2x128xf32>
    %c0_12 = arith.constant 0 : index
    %c0_13 = arith.constant 0 : index
    %16 = vector.load %arg6[%c0_12, %c0_13] : memref<128x128xbf16, #tpu.memory_space<vmem>>, vector<128x128xbf16>
    %c0_14 = arith.constant 0 : index
    %c0_15 = arith.constant 0 : index
    %17 = vector.load %arg7[%c0_14, %c0_15] : memref<1x128xf32, #tpu.memory_space<vmem>>, vector<1x128xf32>
    %18 = arith.truncf %15 : vector<2x128xf32> to vector<2x128xbf16>
    %cst_16 = arith.constant dense<0.000000e+00> : vector<2x128xf32>
    %19 = tpu.matmul %18, %16, %cst_16 {dimension_numbers = #tpu.dot_dimension_numbers<[1], [0], [0], [1], [0, 0, 1, 1], [], []>} : vector<2x128xbf16>, vector<128x128xbf16>, vector<2x128xf32> -> vector<2x128xf32>
    %20 = vector.broadcast %17 : vector<1x128xf32> to vector<2x128xf32>
    %21 = arith.addf %19, %20 : vector<2x128xf32>
    %c0_17 = arith.constant 0 : index
    %c0_18 = arith.constant 0 : index
    %22 = vector.load %arg8[%c0_17, %c0_18] : memref<2x128xf32, #tpu.memory_space<vmem>>, vector<2x128xf32>
    tpu.vector_store %arg8[%c0_17, %c0_18], %21 {strides = array<i32>} : memref<2x128xf32, #tpu.memory_space<vmem>>, vector<2x128xf32>,
    return
  }
  func.func @transform_0(%arg0: i32) -> (i32, i32) {
    %c0_i32 = arith.constant 0 : i32
    %c0_i32_0 = arith.constant 0 : i32
    return %arg0, %c0_i32 : i32, i32
  }
  func.func @transform_1(%arg0: i32) -> (i32, i32) {
    %c0_i32 = arith.constant 0 : i32
    %c0_i32_0 = arith.constant 0 : i32
    %c0_i32_1 = arith.constant 0 : i32
    return %c0_i32, %c0_i32_0 : i32, i32
  }
  func.func @transform_2(%arg0: i32) -> (i32, i32) {
    %c0_i32 = arith.constant 0 : i32
    %c0_i32_0 = arith.constant 0 : i32
    %c0_i32_1 = arith.constant 0 : i32
    return %c0_i32, %c0_i32_0 : i32, i32
  }
  func.func @transform_3(%arg0: i32) -> (i32, i32) {
    %c0_i32 = arith.constant 0 : i32
    %c0_i32_0 = arith.constant 0 : i32
    %c0_i32_1 = arith.constant 0 : i32
    return %c0_i32, %c0_i32_0 : i32, i32
  }
  func.func @transform_4(%arg0: i32) -> (i32, i32) {
    %c0_i32 = arith.constant 0 : i32
    %c0_i32_0 = arith.constant 0 : i32
    %c0_i32_1 = arith.constant 0 : i32
    return %c0_i32, %c0_i32_0 : i32, i32
  }
  func.func @transform_5(%arg0: i32) -> (i32, i32) {
    %c0_i32 = arith.constant 0 : i32
    %c0_i32_0 = arith.constant 0 : i32
    %c0_i32_1 = arith.constant 0 : i32
    return %c0_i32, %c0_i32_0 : i32, i32
  }
  func.func @transform_6(%arg0: i32) -> (i32, i32) {
    %c0_i32 = arith.constant 0 : i32
    %c0_i32_0 = arith.constant 0 : i32
    %c0_i32_1 = arith.constant 0 : i32
    return %c0_i32, %c0_i32_0 : i32, i32
  }
  func.func @transform_7(%arg0: i32) -> (i32, i32) {
    %c0_i32 = arith.constant 0 : i32
    %c0_i32_0 = arith.constant 0 : i32
    return %arg0, %c0_i32 : i32, i32
  }
}

</mosaic_0001>

<llo_original>
// kernel: tpu_custom_call.1
$region0: #{tpu_custom_call.1}
  #allocation0 [shape = 'u32[]', space=smem, size = 0x4, offset = 0x4, fixed_abs, tag = 'smem constant byte address 0x4 - core index']
  #allocation1 [shape = 'u32[144,128]{1,0:T(1,128)}', space=vmem, size = 0x12000, scoped, tag = 'internal scratch']
  %s0 = inlined_call_operand.hbm [shape: bf16[2,1024], index: 0, kind: input, shape index: {}]
  %s1 = inlined_call_operand.hbm [shape: bf16[1024,128], index: 1, kind: input, shape index: {}]
  %s2 = inlined_call_operand.vmem [shape: f32[1,128], index: 2, kind: input, shape index: {}]
  %s3 = inlined_call_operand.hbm [shape: bf16[128,128], index: 3, kind: input, shape index: {}]
  %s4 = inlined_call_operand.vmem [shape: f32[1,128], index: 4, kind: input, shape index: {}]
  %s5 = inlined_call_operand.hbm [shape: bf16[128,128], index: 5, kind: input, shape index: {}]
  %s6 = inlined_call_operand.vmem [shape: f32[1,128], index: 6, kind: input, shape index: {}]
  %s7 = inlined_call_operand.hbm [shape: f32[2,128], index: 7, kind: output, shape index: {}]
  %s8 = sld [smem:[#allocation0]]
  $region54: #{tpu_custom_call.1} parent=0
    _
  %s10 = ssub.s32 1, %s8
  %s11 = scalar_select 0, %s10, %s8
  $region1: #{tpu_custom_call.1} parent=0
    #allocation2 [shape = 'u8[4096]{0}', space=vmem, size = 0x1000, scoped, tag = 'input window, operand 0, single buffered']
    #allocation3 [shape = 's32[1]{0}', space=sflag, size = 0x4, scoped, tag = 'scoped memory for tpu_custom_call.1']
    #allocation4 [shape = 's32[1]{0}', space=sflag, size = 0x4, scoped, tag = 'scoped memory for tpu_custom_call.1']
    #allocation5 [shape = 'u8[262144]{0}', space=vmem, size = 0x40000, scoped, tag = 'input window, operand 1, single buffered']
    #allocation6 [shape = 's32[1]{0}', space=sflag, size = 0x4, scoped, tag = 'scoped memory for tpu_custom_call.1']
    #allocation7 [shape = 'u8[32768]{0}', space=vmem, size = 0x8000, scoped, tag = 'input window, operand 3, single buffered']
    #allocation8 [shape = 'u8[32768]{0}', space=vmem, size = 0x8000, scoped, tag = 'input window, operand 5, single buffered']
    #allocation9 [shape = 's32[1]{0}', space=sflag, size = 0x4, scoped, tag = 'scoped memory for tpu_custom_call.1']
    #allocation10 [shape = 'u8[1024]{0}', space=vmem, size = 0x400, scoped, tag = 'output window, operand 0, single buffered']
    %12 = vsyncpa [#allocation3], 0
    %13 = vsyncpa [#allocation6], 0
    %14 = vsyncpa [#allocation9], 0
    %15 = vsyncpa [#allocation4], 0
    // Predicated region
    $region2: #{tpu_custom_call.1} parent=1 // pred_check
      _
    $region3: #{tpu_custom_call.1} parent=1 // pred_check_branch
      %17 = sbr.rel (0) target = $region5
    $region4: #{tpu_custom_call.1} parent=1 // pred_region
      %s19 = ssub.s32 128, 128
      %20 = vsyncadd [#allocation3], %s19
      %s22 = sshll.u32 [#allocation2], 4
      %s23 = int_to_ptr.vmem [resolvable:$true] %s22
      %25 = dma.hbm_to_vmem [thread:$0]  %s0, 128, %s23, [#allocation3]
    $region5: #{tpu_custom_call.1} parent=1 // pred_fallthru
      _
    // Predicated region
    $region6: #{tpu_custom_call.1} parent=1 // pred_check
      _
    $region7: #{tpu_custom_call.1} parent=1 // pred_check_branch
      %27 = sbr.rel (0) target = $region9
    $region8: #{tpu_custom_call.1} parent=1 // pred_region
      %s29 = ssub.s32 8192, 8192
      %30 = vsyncadd [#allocation6], %s29
      %s31 = sshll.u32 [#allocation5], 4
      %s32 = int_to_ptr.vmem [resolvable:$true] %s31
      %37 = dma.hbm_to_vmem [thread:$0]  %s1, 8192, %s32, [#allocation6], 64, 64, 4
    $region9: #{tpu_custom_call.1} parent=1 // pred_fallthru
      _
    // Predicated region
    $region10: #{tpu_custom_call.1} parent=1 // pred_check
      _
    $region11: #{tpu_custom_call.1} parent=1 // pred_check_branch
      %39 = sbr.rel (0) target = $region13
    $region12: #{tpu_custom_call.1} parent=1 // pred_region
      _
    $region13: #{tpu_custom_call.1} parent=1 // pred_fallthru
      _
    // Predicated region
    $region14: #{tpu_custom_call.1} parent=1 // pred_check
      _
    $region15: #{tpu_custom_call.1} parent=1 // pred_check_branch
      %41 = sbr.rel (0) target = $region17
    $region16: #{tpu_custom_call.1} parent=1 // pred_region
      %s43 = ssub.s32 1024, 1024
      %44 = vsyncadd [#allocation6], %s43
      %s45 = sshll.u32 [#allocation7], 4
      %s46 = int_to_ptr.vmem [resolvable:$true] %s45
      %51 = dma.hbm_to_vmem [thread:$0]  %s3, 1024, %s46, [#allocation6], 64, 64, 4
    $region17: #{tpu_custom_call.1} parent=1 // pred_fallthru
      _
    // Predicated region
    $region18: #{tpu_custom_call.1} parent=1 // pred_check
      _
    $region19: #{tpu_custom_call.1} parent=1 // pred_check_branch
      %53 = sbr.rel (0) target = $region21
    $region20: #{tpu_custom_call.1} parent=1 // pred_region
      _
    $region21: #{tpu_custom_call.1} parent=1 // pred_fallthru
      _
    // Predicated region
    $region22: #{tpu_custom_call.1} parent=1 // pred_check
      _
    $region23: #{tpu_custom_call.1} parent=1 // pred_check_branch
      %55 = sbr.rel (0) target = $region25
    $region24: #{tpu_custom_call.1} parent=1 // pred_region
      %s57 = ssub.s32 1024, 1024
      %58 = vsyncadd [#allocation9], %s57
      %s59 = sshll.u32 [#allocation8], 4
      %s60 = int_to_ptr.vmem [resolvable:$true] %s59
      %65 = dma.hbm_to_vmem [thread:$0]  %s5, 1024, %s60, [#allocation9], 64, 64, 4
    $region25: #{tpu_custom_call.1} parent=1 // pred_fallthru
      _
    // Predicated region
    $region26: #{tpu_custom_call.1} parent=1 // pred_check
      _
    $region27: #{tpu_custom_call.1} parent=1 // pred_check_branch
      %67 = sbr.rel (0) target = $region29
    $region28: #{tpu_custom_call.1} parent=1 // pred_region
      _
    $region29: #{tpu_custom_call.1} parent=1 // pred_fallthru
      _
    // Predicated region
    $region30: #{tpu_custom_call.1} parent=1 // pred_check
      _
    $region31: #{tpu_custom_call.1} parent=1 // pred_check_branch
      %69 = sbr.rel (0) target = $region33
    $region32: #{tpu_custom_call.1} parent=1 // pred_region
      %70 = dma.done [#allocation3], 128
    $region33: #{tpu_custom_call.1} parent=1 // pred_fallthru
      _
    // Predicated region
    $region34: #{tpu_custom_call.1} parent=1 // pred_check
      _
    $region35: #{tpu_custom_call.1} parent=1 // pred_check_branch
      %72 = sbr.rel (0) target = $region37
    $region36: #{tpu_custom_call.1} parent=1 // pred_region
      %73 = dma.done [#allocation6], 8192
    $region37: #{tpu_custom_call.1} parent=1 // pred_fallthru
      _
    // Predicated region
    $region38: #{tpu_custom_call.1} parent=1 // pred_check
      _
    $region39: #{tpu_custom_call.1} parent=1 // pred_check_branch
      %75 = sbr.rel (0) target = $region41
    $region40: #{tpu_custom_call.1} parent=1 // pred_region
      %76 = dma.done [#allocation6], 1024
    $region41: #{tpu_custom_call.1} parent=1 // pred_fallthru
      _
    // Predicated region
    $region42: #{tpu_custom_call.1} parent=1 // pred_check
      _
    $region43: #{tpu_custom_call.1} parent=1 // pred_check_branch
      %78 = sbr.rel (0) target = $region45
    $region44: #{tpu_custom_call.1} parent=1 // pred_region
      %79 = dma.done [#allocation9], 1024
    $region45: #{tpu_custom_call.1} parent=1 // pred_fallthru
      _
    %v81 = vld [vmem:[#allocation2] sm:$0xff]
    %v82 = vld [vmem:[#allocation5] sm:$0xf]
    %v83 = vld [vmem:[#allocation5 + $0x4] sm:$0xf]
    %v84 = vld [vmem:[#allocation5 + $0x8] sm:$0xf]
    %v85 = vld [vmem:[#allocation5 + $0xc] sm:$0xf]
    %v86 = vld [vmem:[#allocation5 + $0x10] sm:$0xf]
    %v87 = vld [vmem:[#allocation5 + $0x14] sm:$0xf]
    %v88 = vld [vmem:[#allocation5 + $0x18] sm:$0xf]
    %v89 = vld [vmem:[#allocation5 + $0x1c] sm:$0xf]
    %v90 = vld [vmem:[#allocation5 + $0x20] sm:$0xf]
    %v91 = vld [vmem:[#allocation5 + $0x24] sm:$0xf]
    %v92 = vld [vmem:[#allocation5 + $0x28] sm:$0xf]
    %v93 = vld [vmem:[#allocation5 + $0x2c] sm:$0xf]
    %v94 = vld [vmem:[#allocation5 + $0x30] sm:$0xf]
    %v95 = vld [vmem:[#allocation5 + $0x34] sm:$0xf]
    %v96 = vld [vmem:[#allocation5 + $0x38] sm:$0xf]
    %v97 = vld [vmem:[#allocation5 + $0x3c] sm:$0xf]
    %v98 = vld [vmem:[#allocation5 + $0x40] sm:$0xf]
    %v99 = vld [vmem:[#allocation5 + $0x44] sm:$0xf]
    %v100 = vld [vmem:[#allocation5 + $0x48] sm:$0xf]
    %v101 = vld [vmem:[#allocation5 + $0x4c] sm:$0xf]
    %v102 = vld [vmem:[#allocation5 + $0x50] sm:$0xf]
    %v103 = vld [vmem:[#allocation5 + $0x54] sm:$0xf]
    %v104 = vld [vmem:[#allocation5 + $0x58] sm:$0xf]
    %v105 = vld [vmem:[#allocation5 + $0x5c] sm:$0xf]
    %v106 = vld [vmem:[#allocation5 + $0x60] sm:$0xf]
    %v107 = vld [vmem:[#allocation5 + $0x64] sm:$0xf]
    %v108 = vld [vmem:[#allocation5 + $0x68] sm:$0xf]
    %v109 = vld [vmem:[#allocation5 + $0x6c] sm:$0xf]
    %v110 = vld [vmem:[#allocation5 + $0x70] sm:$0xf]
    %v111 = vld [vmem:[#allocation5 + $0x74] sm:$0xf]
    %v112 = vld [vmem:[#allocation5 + $0x78] sm:$0xf]
    %v113 = vld [vmem:[#allocation5 + $0x7c] sm:$0xf]
    %v114 = vld [vmem:[#allocation5 + $0x80] sm:$0xf]
    %v115 = vld [vmem:[#allocation5 + $0x84] sm:$0xf]
    %v116 = vld [vmem:[#allocation5 + $0x88] sm:$0xf]
    %v117 = vld [vmem:[#allocation5 + $0x8c] sm:$0xf]
    %v118 = vld [vmem:[#allocation5 + $0x90] sm:$0xf]
    %v119 = vld [vmem:[#allocation5 + $0x94] sm:$0xf]
    %v120 = vld [vmem:[#allocation5 + $0x98] sm:$0xf]
    %v121 = vld [vmem:[#allocation5 + $0x9c] sm:$0xf]
    %v122 = vld [vmem:[#allocation5 + $0xa0] sm:$0xf]
    %v123 = vld [vmem:[#allocation5 + $0xa4] sm:$0xf]
    %v124 = vld [vmem:[#allocation5 + $0xa8] sm:$0xf]
    %v125 = vld [vmem:[#allocation5 + $0xac] sm:$0xf]
    %v126 = vld [vmem:[#allocation5 + $0xb0] sm:$0xf]
    %v127 = vld [vmem:[#allocation5 + $0xb4] sm:$0xf]
    %v128 = vld [vmem:[#allocation5 + $0xb8] sm:$0xf]
    %v129 = vld [vmem:[#allocation5 + $0xbc] sm:$0xf]
    %v130 = vld [vmem:[#allocation5 + $0xc0] sm:$0xf]
    %v131 = vld [vmem:[#allocation5 + $0xc4] sm:$0xf]
    %v132 = vld [vmem:[#allocation5 + $0xc8] sm:$0xf]
    %v133 = vld [vmem:[#allocation5 + $0xcc] sm:$0xf]
    %v134 = vld [vmem:[#allocation5 + $0xd0] sm:$0xf]
    %v135 = vld [vmem:[#allocation5 + $0xd4] sm:$0xf]
    %v136 = vld [vmem:[#allocation5 + $0xd8] sm:$0xf]
    %v137 = vld [vmem:[#allocation5 + $0xdc] sm:$0xf]
    %v138 = vld [vmem:[#allocation5 + $0xe0] sm:$0xf]
    %v139 = vld [vmem:[#allocation5 + $0xe4] sm:$0xf]
    %v140 = vld [vmem:[#allocation5 + $0xe8] sm:$0xf]
    %v141 = vld [vmem:[#allocation5 + $0xec] sm:$0xf]
    %v142 = vld [vmem:[#allocation5 + $0xf0] sm:$0xf]
    %v143 = vld [vmem:[#allocation5 + $0xf4] sm:$0xf]
    %v144 = vld [vmem:[#allocation5 + $0xf8] sm:$0xf]
    %v145 = vld [vmem:[#allocation5 + $0xfc] sm:$0xf]
    %v146 = vld [vmem:[#allocation5 + $0x100] sm:$0xf]
    %v147 = vld [vmem:[#allocation5 + $0x104] sm:$0xf]
    %v148 = vld [vmem:[#allocation5 + $0x108] sm:$0xf]
    %v149 = vld [vmem:[#allocation5 + $0x10c] sm:$0xf]
    %v150 = vld [vmem:[#allocation5 + $0x110] sm:$0xf]
    %v151 = vld [vmem:[#allocation5 + $0x114] sm:$0xf]
    %v152 = vld [vmem:[#allocation5 + $0x118] sm:$0xf]
    %v153 = vld [vmem:[#allocation5 + $0x11c] sm:$0xf]
    %v154 = vld [vmem:[#allocation5 + $0x120] sm:$0xf]
    %v155 = vld [vmem:[#allocation5 + $0x124] sm:$0xf]
    %v156 = vld [vmem:[#allocation5 + $0x128] sm:$0xf]
    %v157 = vld [vmem:[#allocation5 + $0x12c] sm:$0xf]
    %v158 = vld [vmem:[#allocation5 + $0x130] sm:$0xf]
    %v159 = vld [vmem:[#allocation5 + $0x134] sm:$0xf]
    %v160 = vld [vmem:[#allocation5 + $0x138] sm:$0xf]
    %v161 = vld [vmem:[#allocation5 + $0x13c] sm:$0xf]
    %v162 = vld [vmem:[#allocation5 + $0x140] sm:$0xf]
    %v163 = vld [vmem:[#allocation5 + $0x144] sm:$0xf]
    %v164 = vld [vmem:[#allocation5 + $0x148] sm:$0xf]
    %v165 = vld [vmem:[#allocation5 + $0x14c] sm:$0xf]
    %v166 = vld [vmem:[#allocation5 + $0x150] sm:$0xf]
    %v167 = vld [vmem:[#allocation5 + $0x154] sm:$0xf]
    %v168 = vld [vmem:[#allocation5 + $0x158] sm:$0xf]
    %v169 = vld [vmem:[#allocation5 + $0x15c] sm:$0xf]
    %v170 = vld [vmem:[#allocation5 + $0x160] sm:$0xf]
    %v171 = vld [vmem:[#allocation5 + $0x164] sm:$0xf]
    %v172 = vld [vmem:[#allocation5 + $0x168] sm:$0xf]
    %v173 = vld [vmem:[#allocation5 + $0x16c] sm:$0xf]
    %v174 = vld [vmem:[#allocation5 + $0x170] sm:$0xf]
    %v175 = vld [vmem:[#allocation5 + $0x174] sm:$0xf]
    %v176 = vld [vmem:[#allocation5 + $0x178] sm:$0xf]
    %v177 = vld [vmem:[#allocation5 + $0x17c] sm:$0xf]
    %v178 = vld [vmem:[#allocation5 + $0x180] sm:$0xf]
    %v179 = vld [vmem:[#allocation5 + $0x184] sm:$0xf]
    %v180 = vld [vmem:[#allocation5 + $0x188] sm:$0xf]
    %v181 = vld [vmem:[#allocation5 + $0x18c] sm:$0xf]
    %v182 = vld [vmem:[#allocation5 + $0x190] sm:$0xf]
    %v183 = vld [vmem:[#allocation5 + $0x194] sm:$0xf]
    %v184 = vld [vmem:[#allocation5 + $0x198] sm:$0xf]
    %v185 = vld [vmem:[#allocation5 + $0x19c] sm:$0xf]
    %v186 = vld [vmem:[#allocation5 + $0x1a0] sm:$0xf]
    %v187 = vld [vmem:[#allocation5 + $0x1a4] sm:$0xf]
    %v188 = vld [vmem:[#allocation5 + $0x1a8] sm:$0xf]
    %v189 = vld [vmem:[#allocation5 + $0x1ac] sm:$0xf]
    %v190 = vld [vmem:[#allocation5 + $0x1b0] sm:$0xf]
    %v191 = vld [vmem:[#allocation5 + $0x1b4] sm:$0xf]
    %v192 = vld [vmem:[#allocation5 + $0x1b8] sm:$0xf]
    %v193 = vld [vmem:[#allocation5 + $0x1bc] sm:$0xf]
    %v194 = vld [vmem:[#allocation5 + $0x1c0] sm:$0xf]
    %v195 = vld [vmem:[#allocation5 + $0x1c4] sm:$0xf]
    %v196 = vld [vmem:[#allocation5 + $0x1c8] sm:$0xf]
    %v197 = vld [vmem:[#allocation5 + $0x1cc] sm:$0xf]
    %v198 = vld [vmem:[#allocation5 + $0x1d0] sm:$0xf]
    %v199 = vld [vmem:[#allocation5 + $0x1d4] sm:$0xf]
    %v200 = vld [vmem:[#allocation5 + $0x1d8] sm:$0xf]
    %v201 = vld [vmem:[#allocation5 + $0x1dc] sm:$0xf]
    %v202 = vld [vmem:[#allocation5 + $0x1e0] sm:$0xf]
    %v203 = vld [vmem:[#allocation5 + $0x1e4] sm:$0xf]
    %v204 = vld [vmem:[#allocation5 + $0x1e8] sm:$0xf]
    %v205 = vld [vmem:[#allocation5 + $0x1ec] sm:$0xf]
    %v206 = vld [vmem:[#allocation5 + $0x1f0] sm:$0xf]
    %v207 = vld [vmem:[#allocation5 + $0x1f4] sm:$0xf]
    %v208 = vld [vmem:[#allocation5 + $0x1f8] sm:$0xf]
    %v209 = vld [vmem:[#allocation5 + $0x1fc] sm:$0xf]
    %v210 = vld [vmem:[%s2] sm:$0x1]
    %v212 = vlaneseq
    %v213 = vshrl.u32 %v212, 7
    %v214 = vsub.s32 0, %v213
    %v215 = vrot.slane %v210, %v214
    %v218 = vcombine.high %v81, %v81
    %v220 = vunpack.c.l.s4 1966171168
    %v221 = vunpack.c.0.s8 %v220
    %v222 = vlaneseq
    %v223 = vshrl.u32 %v222, 7
    %v224 = vsub.s32 %v221, %v223
    %v225 = vrot.slane %v81, %v224
    %v227 = vunpack.c.l.s4 1966171168
    %v228 = vunpack.c.0.s8 %v227
    %v229 = vlaneseq
    %v230 = vshrl.u32 %v229, 7
    %v231 = vsub.s32 %v228, %v230
    %v232 = vrot.slane %v218, %v231
    %v233 = vcombine.high %v225, %v225
    %v234 = vcombine.high %v232, %v232
    %v236 = vunpack.c.l.s4 1966171168
    %v237 = vunpack.c.0.s8 %v236
    %v238 = vlaneseq
    %v239 = vshrl.u32 %v238, 7
    %v240 = vsub.s32 %v237, %v239
    %v241 = vrot.slane %v225, %v240
    %v243 = vunpack.c.l.s4 1966171168
    %v244 = vunpack.c.0.s8 %v243
    %v245 = vlaneseq
    %v246 = vshrl.u32 %v245, 7
    %v247 = vsub.s32 %v244, %v246
    %v248 = vrot.slane %v232, %v247
    %v250 = vunpack.c.l.s4 1966171168
    %v251 = vunpack.c.0.s8 %v250
    %v252 = vlaneseq
    %v253 = vshrl.u32 %v252, 7
    %v254 = vsub.s32 %v251, %v253
    %v255 = vrot.slane %v233, %v254
    %v257 = vunpack.c.l.s4 1966171168
    %v258 = vunpack.c.0.s8 %v257
    %v259 = vlaneseq
    %v260 = vshrl.u32 %v259, 7
    %v261 = vsub.s32 %v258, %v260
    %v262 = vrot.slane %v234, %v261
    %v263 = vcombine.high %v241, %v241
    %v264 = vcombine.high %v248, %v248
    %v265 = vcombine.high %v255, %v255
    %v266 = vcombine.high %v262, %v262
    %v403 = vunpack.c.l.b16 %v82
    %v404 = vunpack.c.l.b16 %v83
    %v405 = vunpack.c.l.b16 %v84
    %v406 = vunpack.c.l.b16 %v85
    %v407 = vunpack.c.l.b16 %v86
    %v408 = vunpack.c.l.b16 %v87
    %v409 = vunpack.c.l.b16 %v88
    %v410 = vunpack.c.l.b16 %v89
    %v411 = vunpack.c.l.b16 %v90
    %v412 = vunpack.c.l.b16 %v91
    %v413 = vunpack.c.l.b16 %v92
    %v414 = vunpack.c.l.b16 %v93
    %v415 = vunpack.c.l.b16 %v94
    %v416 = vunpack.c.l.b16 %v95
    %v417 = vunpack.c.l.b16 %v96
    %v418 = vunpack.c.l.b16 %v97
    %v419 = vunpack.c.l.b16 %v98
    %v420 = vunpack.c.l.b16 %v99
    %v421 = vunpack.c.l.b16 %v100
    %v422 = vunpack.c.l.b16 %v101
    %v423 = vunpack.c.l.b16 %v102
    %v424 = vunpack.c.l.b16 %v103
    %v425 = vunpack.c.l.b16 %v104
    %v426 = vunpack.c.l.b16 %v105
    %v427 = vunpack.c.l.b16 %v106
    %v428 = vunpack.c.l.b16 %v107
    %v429 = vunpack.c.l.b16 %v108
    %v430 = vunpack.c.l.b16 %v109
    %v431 = vunpack.c.l.b16 %v110
    %v432 = vunpack.c.l.b16 %v111
    %v433 = vunpack.c.l.b16 %v112
    %v434 = vunpack.c.l.b16 %v113
    %v435 = vunpack.c.l.b16 %v114
    %v436 = vunpack.c.l.b16 %v115
    %v437 = vunpack.c.l.b16 %v116
    %v438 = vunpack.c.l.b16 %v117
    %v439 = vunpack.c.l.b16 %v118
    %v440 = vunpack.c.l.b16 %v119
    %v441 = vunpack.c.l.b16 %v120
    %v442 = vunpack.c.l.b16 %v121
    %v443 = vunpack.c.l.b16 %v122
    %v444 = vunpack.c.l.b16 %v123
    %v445 = vunpack.c.l.b16 %v124
    %v446 = vunpack.c.l.b16 %v125
    %v447 = vunpack.c.l.b16 %v126
    %v448 = vunpack.c.l.b16 %v127
    %v449 = vunpack.c.l.b16 %v128
    %v450 = vunpack.c.l.b16 %v129
    %v451 = vunpack.c.l.b16 %v130
    %v452 = vunpack.c.l.b16 %v131
    %v453 = vunpack.c.l.b16 %v132
    %v454 = vunpack.c.l.b16 %v133
    %v455 = vunpack.c.l.b16 %v134
    %v456 = vunpack.c.l.b16 %v135
    %v457 = vunpack.c.l.b16 %v136
    %v458 = vunpack.c.l.b16 %v137
    %v459 = vunpack.c.l.b16 %v138
    %v460 = vunpack.c.l.b16 %v139
    %v461 = vunpack.c.l.b16 %v140
    %v462 = vunpack.c.l.b16 %v141
    %v463 = vunpack.c.l.b16 %v142
    %v464 = vunpack.c.l.b16 %v143
    %v465 = vunpack.c.l.b16 %v144
    %v466 = vunpack.c.l.b16 %v145
    %v467 = vunpack.c.l.b16 %v146
    %v468 = vunpack.c.l.b16 %v147
    %v469 = vunpack.c.l.b16 %v148
    %v470 = vunpack.c.l.b16 %v149
    %v471 = vunpack.c.l.b16 %v150
    %v472 = vunpack.c.l.b16 %v151
    %v473 = vunpack.c.l.b16 %v152
    %v474 = vunpack.c.l.b16 %v153
    %v475 = vunpack.c.l.b16 %v154
    %v476 = vunpack.c.l.b16 %v155
    %v477 = vunpack.c.l.b16 %v156
    %v478 = vunpack.c.l.b16 %v157
    %v479 = vunpack.c.l.b16 %v158
    %v480 = vunpack.c.l.b16 %v159
    %v481 = vunpack.c.l.b16 %v160
    %v482 = vunpack.c.l.b16 %v161
    %v483 = vunpack.c.l.b16 %v162
    %v484 = vunpack.c.l.b16 %v163
    %v485 = vunpack.c.l.b16 %v164
    %v486 = vunpack.c.l.b16 %v165
    %v487 = vunpack.c.l.b16 %v166
    %v488 = vunpack.c.l.b16 %v167
    %v489 = vunpack.c.l.b16 %v168
    %v490 = vunpack.c.l.b16 %v169
    %v491 = vunpack.c.l.b16 %v170
    %v492 = vunpack.c.l.b16 %v171
    %v493 = vunpack.c.l.b16 %v172
    %v494 = vunpack.c.l.b16 %v173
    %v495 = vunpack.c.l.b16 %v174
    %v496 = vunpack.c.l.b16 %v175
    %v497 = vunpack.c.l.b16 %v176
    %v498 = vunpack.c.l.b16 %v177
    %v499 = vunpack.c.l.b16 %v178
    %v500 = vunpack.c.l.b16 %v179
    %v501 = vunpack.c.l.b16 %v180
    %v502 = vunpack.c.l.b16 %v181
    %v503 = vunpack.c.l.b16 %v182
    %v504 = vunpack.c.l.b16 %v183
    %v505 = vunpack.c.l.b16 %v184
    %v506 = vunpack.c.l.b16 %v185
    %v507 = vunpack.c.l.b16 %v186
    %v508 = vunpack.c.l.b16 %v187
    %v509 = vunpack.c.l.b16 %v188
    %v510 = vunpack.c.l.b16 %v189
    %v511 = vunpack.c.l.b16 %v190
    %v512 = vunpack.c.l.b16 %v191
    %v513 = vunpack.c.l.b16 %v192
    %v514 = vunpack.c.l.b16 %v193
    %v515 = vunpack.c.l.b16 %v194
    %v516 = vunpack.c.l.b16 %v195
    %v517 = vunpack.c.l.b16 %v196
    %v518 = vunpack.c.l.b16 %v197
    %v519 = vunpack.c.l.b16 %v198
    %v520 = vunpack.c.l.b16 %v199
    %v521 = vunpack.c.l.b16 %v200
    %v522 = vunpack.c.l.b16 %v201
    %v523 = vunpack.c.l.b16 %v202
    %v524 = vunpack.c.l.b16 %v203
    %v525 = vunpack.c.l.b16 %v204
    %v526 = vunpack.c.l.b16 %v205
    %v527 = vunpack.c.l.b16 %v206
    %v528 = vunpack.c.l.b16 %v207
    %v529 = vunpack.c.l.b16 %v208
    %v530 = vunpack.c.l.b16 %v209
    %v531 = vpack.c.b16 %v404, %v403
    %v532 = vpack.c.b16 %v406, %v405
    %v533 = vpack.c.b16 %v408, %v407
    %v534 = vpack.c.b16 %v410, %v409
    %v535 = vpack.c.b16 %v412, %v411
    %v536 = vpack.c.b16 %v414, %v413
    %v537 = vpack.c.b16 %v416, %v415
    %v538 = vpack.c.b16 %v418, %v417
    %v539 = vpack.c.b16 %v420, %v419
    %v540 = vpack.c.b16 %v422, %v421
    %v541 = vpack.c.b16 %v424, %v423
    %v542 = vpack.c.b16 %v426, %v425
    %v543 = vpack.c.b16 %v428, %v427
    %v544 = vpack.c.b16 %v430, %v429
    %v545 = vpack.c.b16 %v432, %v431
    %v546 = vpack.c.b16 %v434, %v433
    %v547 = vpack.c.b16 %v436, %v435
    %v548 = vpack.c.b16 %v438, %v437
    %v549 = vpack.c.b16 %v440, %v439
    %v550 = vpack.c.b16 %v442, %v441
    %v551 = vpack.c.b16 %v444, %v443
    %v552 = vpack.c.b16 %v446, %v445
    %v553 = vpack.c.b16 %v448, %v447
    %v554 = vpack.c.b16 %v450, %v449
    %v555 = vpack.c.b16 %v452, %v451
    %v556 = vpack.c.b16 %v454, %v453
    %v557 = vpack.c.b16 %v456, %v455
    %v558 = vpack.c.b16 %v458, %v457
    %v559 = vpack.c.b16 %v460, %v459
    %v560 = vpack.c.b16 %v462, %v461
    %v561 = vpack.c.b16 %v464, %v463
    %v562 = vpack.c.b16 %v466, %v465
    %v563 = vpack.c.b16 %v468, %v467
    %v564 = vpack.c.b16 %v470, %v469
    %v565 = vpack.c.b16 %v472, %v471
    %v566 = vpack.c.b16 %v474, %v473
    %v567 = vpack.c.b16 %v476, %v475
    %v568 = vpack.c.b16 %v478, %v477
    %v569 = vpack.c.b16 %v480, %v479
    %v570 = vpack.c.b16 %v482, %v481
    %v571 = vpack.c.b16 %v484, %v483
    %v572 = vpack.c.b16 %v486, %v485
    %v573 = vpack.c.b16 %v488, %v487
    %v574 = vpack.c.b16 %v490, %v489
    %v575 = vpack.c.b16 %v492, %v491
    %v576 = vpack.c.b16 %v494, %v493
    %v577 = vpack.c.b16 %v496, %v495
    %v578 = vpack.c.b16 %v498, %v497
    %v579 = vpack.c.b16 %v500, %v499
    %v580 = vpack.c.b16 %v502, %v501
    %v581 = vpack.c.b16 %v504, %v503
    %v582 = vpack.c.b16 %v506, %v505
    %v583 = vpack.c.b16 %v508, %v507
    %v584 = vpack.c.b16 %v510, %v509
    %v585 = vpack.c.b16 %v512, %v511
    %v586 = vpack.c.b16 %v514, %v513
    %v587 = vpack.c.b16 %v516, %v515
    %v588 = vpack.c.b16 %v518, %v517
    %v589 = vpack.c.b16 %v520, %v519
    %v590 = vpack.c.b16 %v522, %v521
    %v591 = vpack.c.b16 %v524, %v523
    %v592 = vpack.c.b16 %v526, %v525
    %v593 = vpack.c.b16 %v528, %v527
    %v594 = vpack.c.b16 %v530, %v529
    %659 = vmatprep.subr.bf16.mxu0 0
    %660 = vmatpush1.bf16.msra.mxu0 %v531
    %661 = vmatprep.subr.bf16.mxu0 0
    %662 = vmatpush1.bf16.msra.mxu0 %v532
    %663 = vmatprep.subr.bf16.mxu0 0
    %664 = vmatpush1.bf16.msra.mxu0 %v533
    %665 = vmatprep.subr.bf16.mxu0 0
    %666 = vmatpush1.bf16.msra.mxu0 %v534
    %667 = vmatprep.subr.bf16.mxu0 0
    %668 = vmatpush1.bf16.msra.mxu0 %v535
    %669 = vmatprep.subr.bf16.mxu0 0
    %670 = vmatpush1.bf16.msra.mxu0 %v536
    %671 = vmatprep.subr.bf16.mxu0 0
    %672 = vmatpush1.bf16.msra.mxu0 %v537
    %673 = vmatprep.subr.bf16.mxu0 0
    %674 = vmatpush1.bf16.msra.mxu0 %v538
    %675 = vmatprep.subr.bf16.mxu0 0
    %676 = vmatpush1.bf16.msra.mxu0 %v539
    %677 = vmatprep.subr.bf16.mxu0 0
    %678 = vmatpush1.bf16.msra.mxu0 %v540
    %679 = vmatprep.subr.bf16.mxu0 0
    %680 = vmatpush1.bf16.msra.mxu0 %v541
    %681 = vmatprep.subr.bf16.mxu0 0
    %682 = vmatpush1.bf16.msra.mxu0 %v542
    %683 = vmatprep.subr.bf16.mxu0 0
    %684 = vmatpush1.bf16.msra.mxu0 %v543
    %685 = vmatprep.subr.bf16.mxu0 0
    %686 = vmatpush1.bf16.msra.mxu0 %v544
    %687 = vmatprep.subr.bf16.mxu0 0
    %688 = vmatpush1.bf16.msra.mxu0 %v545
    %689 = vmatprep.subr.bf16.mxu0 0
    %690 = vmatpush1.bf16.msra.mxu0 %v546
    %691 = vmatprep.mubr.bf16.mxu0 %v255
    %692 = vmatmul.mubr.bf16.gmra.mrb[0].mxu0 %v241
    %v693 = vpop.f32.mrb[0].mxu0
    %v694 = vadd.f32 %v215, %v693
    %v695 = vpop.f32.mrb[0].mxu0
    %v696 = vpop.f32.mrb[0].mxu0
    %v697 = vpop.f32.mrb[0].mxu0
    %698 = vdwg.mxu0
    %699 = vmatprep.subr.bf16.mxu0 0
    %700 = vmatpush1.bf16.msra.mxu0 %v547
    %701 = vmatprep.subr.bf16.mxu0 0
    %702 = vmatpush1.bf16.msra.mxu0 %v548
    %703 = vmatprep.subr.bf16.mxu0 0
    %704 = vmatpush1.bf16.msra.mxu0 %v549
    %705 = vmatprep.subr.bf16.mxu0 0
    %706 = vmatpush1.bf16.msra.mxu0 %v550
    %707 = vmatprep.subr.bf16.mxu0 0
    %708 = vmatpush1.bf16.msra.mxu0 %v551
    %709 = vmatprep.subr.bf16.mxu0 0
    %710 = vmatpush1.bf16.msra.mxu0 %v552
    %711 = vmatprep.subr.bf16.mxu0 0
    %712 = vmatpush1.bf16.msra.mxu0 %v553
    %713 = vmatprep.subr.bf16.mxu0 0
    %714 = vmatpush1.bf16.msra.mxu0 %v554
    %715 = vmatprep.subr.bf16.mxu0 0
    %716 = vmatpush1.bf16.msra.mxu0 %v555
    %717 = vmatprep.subr.bf16.mxu0 0
    %718 = vmatpush1.bf16.msra.mxu0 %v556
    %719 = vmatprep.subr.bf16.mxu0 0
    %720 = vmatpush1.bf16.msra.mxu0 %v557
    %721 = vmatprep.subr.bf16.mxu0 0
    %722 = vmatpush1.bf16.msra.mxu0 %v558
    %723 = vmatprep.subr.bf16.mxu0 0
    %724 = vmatpush1.bf16.msra.mxu0 %v559
    %725 = vmatprep.subr.bf16.mxu0 0
    %726 = vmatpush1.bf16.msra.mxu0 %v560
    %727 = vmatprep.subr.bf16.mxu0 0
    %728 = vmatpush1.bf16.msra.mxu0 %v561
    %729 = vmatprep.subr.bf16.mxu0 0
    %730 = vmatpush1.bf16.msra.mxu0 %v562
    %731 = vmatprep.mubr.bf16.mxu0 %v265
    %732 = vmatmul.mubr.bf16.gmra.mrb[0].mxu0 %v263
    %v733 = vpop.f32.mrb[0].mxu0
    %v734 = vadd.f32 %v694, %v733
    %v735 = vpop.f32.mrb[0].mxu0
    %v736 = vpop.f32.mrb[0].mxu0
    %v737 = vpop.f32.mrb[0].mxu0
    %738 = vdwg.mxu0
    %739 = vmatprep.subr.bf16.mxu0 0
    %740 = vmatpush1.bf16.msra.mxu0 %v563
    %741 = vmatprep.subr.bf16.mxu0 0
    %742 = vmatpush1.bf16.msra.mxu0 %v564
    %743 = vmatprep.subr.bf16.mxu0 0
    %744 = vmatpush1.bf16.msra.mxu0 %v565
    %745 = vmatprep.subr.bf16.mxu0 0
    %746 = vmatpush1.bf16.msra.mxu0 %v566
    %747 = vmatprep.subr.bf16.mxu0 0
    %748 = vmatpush1.bf16.msra.mxu0 %v567
    %749 = vmatprep.subr.bf16.mxu0 0
    %750 = vmatpush1.bf16.msra.mxu0 %v568
    %751 = vmatprep.subr.bf16.mxu0 0
    %752 = vmatpush1.bf16.msra.mxu0 %v569
    %753 = vmatprep.subr.bf16.mxu0 0
    %754 = vmatpush1.bf16.msra.mxu0 %v570
    %755 = vmatprep.subr.bf16.mxu0 0
    %756 = vmatpush1.bf16.msra.mxu0 %v571
    %757 = vmatprep.subr.bf16.mxu0 0
    %758 = vmatpush1.bf16.msra.mxu0 %v572
    %759 = vmatprep.subr.bf16.mxu0 0
    %760 = vmatpush1.bf16.msra.mxu0 %v573
    %761 = vmatprep.subr.bf16.mxu0 0
    %762 = vmatpush1.bf16.msra.mxu0 %v574
    %763 = vmatprep.subr.bf16.mxu0 0
    %764 = vmatpush1.bf16.msra.mxu0 %v575
    %765 = vmatprep.subr.bf16.mxu0 0
    %766 = vmatpush1.bf16.msra.mxu0 %v576
    %767 = vmatprep.subr.bf16.mxu0 0
    %768 = vmatpush1.bf16.msra.mxu0 %v577
    %769 = vmatprep.subr.bf16.mxu0 0
    %770 = vmatpush1.bf16.msra.mxu0 %v578
    %771 = vmatprep.mubr.bf16.mxu0 %v262
    %772 = vmatmul.mubr.bf16.gmra.mrb[0].mxu0 %v248
    %v773 = vpop.f32.mrb[0].mxu0
    %v774 = vadd.f32 %v734, %v773
    %v775 = vpop.f32.mrb[0].mxu0
    %v776 = vpop.f32.mrb[0].mxu0
    %v777 = vpop.f32.mrb[0].mxu0
    %778 = vdwg.mxu0
    %779 = vmatprep.subr.bf16.mxu0 0
    %780 = vmatpush1.bf16.msra.mxu0 %v579
    %781 = vmatprep.subr.bf16.mxu0 0
    %782 = vmatpush1.bf16.msra.mxu0 %v580
    %783 = vmatprep.subr.bf16.mxu0 0
    %784 = vmatpush1.bf16.msra.mxu0 %v581
    %785 = vmatprep.subr.bf16.mxu0 0
    %786 = vmatpush1.bf16.msra.mxu0 %v582
    %787 = vmatprep.subr.bf16.mxu0 0
    %788 = vmatpush1.bf16.msra.mxu0 %v583
    %789 = vmatprep.subr.bf16.mxu0 0
    %790 = vmatpush1.bf16.msra.mxu0 %v584
    %791 = vmatprep.subr.bf16.mxu0 0
    %792 = vmatpush1.bf16.msra.mxu0 %v585
    %793 = vmatprep.subr.bf16.mxu0 0
    %794 = vmatpush1.bf16.msra.mxu0 %v586
    %795 = vmatprep.subr.bf16.mxu0 0
    %796 = vmatpush1.bf16.msra.mxu0 %v587
    %797 = vmatprep.subr.bf16.mxu0 0
    %798 = vmatpush1.bf16.msra.mxu0 %v588
    %799 = vmatprep.subr.bf16.mxu0 0
    %800 = vmatpush1.bf16.msra.mxu0 %v589
    %801 = vmatprep.subr.bf16.mxu0 0
    %802 = vmatpush1.bf16.msra.mxu0 %v590
    %803 = vmatprep.subr.bf16.mxu0 0
    %804 = vmatpush1.bf16.msra.mxu0 %v591
    %805 = vmatprep.subr.bf16.mxu0 0
    %806 = vmatpush1.bf16.msra.mxu0 %v592
    %807 = vmatprep.subr.bf16.mxu0 0
    %808 = vmatpush1.bf16.msra.mxu0 %v593
    %809 = vmatprep.subr.bf16.mxu0 0
    %810 = vmatpush1.bf16.msra.mxu0 %v594
    %811 = vmatprep.mubr.bf16.mxu0 %v266
    %812 = vmatmul.mubr.bf16.gmra.mrb[0].mxu0 %v264
    %v813 = vpop.f32.mrb[0].mxu0
    %v814 = vadd.f32 %v774, %v813
    %v815 = vpop.f32.mrb[0].mxu0
    %v816 = vpop.f32.mrb[0].mxu0
    %v817 = vpop.f32.mrb[0].mxu0
    %818 = vdwg.mxu0
    %v819 = vmax.f32 %v814, 0.0
    %v820 = vld [vmem:[#allocation7] sm:$0xf]
    %v821 = vld [vmem:[#allocation7 + $0x4] sm:$0xf]
    %v822 = vld [vmem:[#allocation7 + $0x8] sm:$0xf]
    %v823 = vld [vmem:[#allocation7 + $0xc] sm:$0xf]
    %v824 = vld [vmem:[#allocation7 + $0x10] sm:$0xf]
    %v825 = vld [vmem:[#allocation7 + $0x14] sm:$0xf]
    %v826 = vld [vmem:[#allocation7 + $0x18] sm:$0xf]
    %v827 = vld [vmem:[#allocation7 + $0x1c] sm:$0xf]
    %v828 = vld [vmem:[#allocation7 + $0x20] sm:$0xf]
    %v829 = vld [vmem:[#allocation7 + $0x24] sm:$0xf]
    %v830 = vld [vmem:[#allocation7 + $0x28] sm:$0xf]
    %v831 = vld [vmem:[#allocation7 + $0x2c] sm:$0xf]
    %v832 = vld [vmem:[#allocation7 + $0x30] sm:$0xf]
    %v833 = vld [vmem:[#allocation7 + $0x34] sm:$0xf]
    %v834 = vld [vmem:[#allocation7 + $0x38] sm:$0xf]
    %v835 = vld [vmem:[#allocation7 + $0x3c] sm:$0xf]
    %v836 = vld [vmem:[%s4] sm:$0x1]
    %v837 = vpack.c.bf16 %v819, %v819
    %v839 = vlaneseq
    %v840 = vshrl.u32 %v839, 7
    %v841 = vsub.s32 0, %v840
    %v842 = vrot.slane %v836, %v841
    %v860 = vunpack.c.l.b16 %v820
    %v861 = vunpack.c.l.b16 %v821
    %v862 = vunpack.c.l.b16 %v822
    %v863 = vunpack.c.l.b16 %v823
    %v864 = vunpack.c.l.b16 %v824
    %v865 = vunpack.c.l.b16 %v825
    %v866 = vunpack.c.l.b16 %v826
    %v867 = vunpack.c.l.b16 %v827
    %v868 = vunpack.c.l.b16 %v828
    %v869 = vunpack.c.l.b16 %v829
    %v870 = vunpack.c.l.b16 %v830
    %v871 = vunpack.c.l.b16 %v831
    %v872 = vunpack.c.l.b16 %v832
    %v873 = vunpack.c.l.b16 %v833
    %v874 = vunpack.c.l.b16 %v834
    %v875 = vunpack.c.l.b16 %v835
    %v876 = vpack.c.b16 %v861, %v860
    %v877 = vpack.c.b16 %v863, %v862
    %v878 = vpack.c.b16 %v865, %v864
    %v879 = vpack.c.b16 %v867, %v866
    %v880 = vpack.c.b16 %v869, %v868
    %v881 = vpack.c.b16 %v871, %v870
    %v882 = vpack.c.b16 %v873, %v872
    %v883 = vpack.c.b16 %v875, %v874
    %892 = vmatprep.subr.bf16.mxu0 0
    %893 = vmatpush1.bf16.msra.mxu0 %v876
    %894 = vmatprep.subr.bf16.mxu0 0
    %895 = vmatpush1.bf16.msra.mxu0 %v877
    %896 = vmatprep.subr.bf16.mxu0 0
    %897 = vmatpush1.bf16.msra.mxu0 %v878
    %898 = vmatprep.subr.bf16.mxu0 0
    %899 = vmatpush1.bf16.msra.mxu0 %v879
    %900 = vmatprep.subr.bf16.mxu0 0
    %901 = vmatpush1.bf16.msra.mxu0 %v880
    %902 = vmatprep.subr.bf16.mxu0 0
    %903 = vmatpush1.bf16.msra.mxu0 %v881
    %904 = vmatprep.subr.bf16.mxu0 0
    %905 = vmatpush1.bf16.msra.mxu0 %v882
    %906 = vmatprep.subr.bf16.mxu0 0
    %907 = vmatpush1.bf16.msra.mxu0 %v883
    %908 = vmatprep.subr.bf16.mxu0 0
    %909 = vmatpush1.bf16.msra.mxu0 0
    %910 = vmatprep.subr.bf16.mxu0 0
    %911 = vmatpush1.bf16.msra.mxu0 0
    %912 = vmatprep.subr.bf16.mxu0 0
    %913 = vmatpush1.bf16.msra.mxu0 0
    %914 = vmatprep.subr.bf16.mxu0 0
    %915 = vmatpush1.bf16.msra.mxu0 0
    %916 = vmatprep.subr.bf16.mxu0 0
    %917 = vmatpush1.bf16.msra.mxu0 0
    %918 = vmatprep.subr.bf16.mxu0 0
    %919 = vmatpush1.bf16.msra.mxu0 0
    %920 = vmatprep.subr.bf16.mxu0 0
    %921 = vmatpush1.bf16.msra.mxu0 0
    %922 = vmatprep.subr.bf16.mxu0 0
    %923 = vmatpush1.bf16.msra.mxu0 0
    %924 = vmatprep.mubr.bf16.mxu0 0
    %925 = vmatmul.mubr.bf16.gmra.mrb[0].mxu0 %v837
    %v926 = vpop.f32.mrb[0].mxu0
    %v927 = vadd.f32 %v842, %v926
    %v928 = vpop.f32.mrb[0].mxu0
    %v929 = vpop.f32.mrb[0].mxu0
    %v930 = vpop.f32.mrb[0].mxu0
    %931 = vdwg.mxu0
    %v932 = vmax.f32 %v927, 0.0
    %v933 = vld [vmem:[#allocation8] sm:$0xf]
    %v934 = vld [vmem:[#allocation8 + $0x4] sm:$0xf]
    %v935 = vld [vmem:[#allocation8 + $0x8] sm:$0xf]
    %v936 = vld [vmem:[#allocation8 + $0xc] sm:$0xf]
    %v937 = vld [vmem:[#allocation8 + $0x10] sm:$0xf]
    %v938 = vld [vmem:[#allocation8 + $0x14] sm:$0xf]
    %v939 = vld [vmem:[#allocation8 + $0x18] sm:$0xf]
    %v940 = vld [vmem:[#allocation8 + $0x1c] sm:$0xf]
    %v941 = vld [vmem:[#allocation8 + $0x20] sm:$0xf]
    %v942 = vld [vmem:[#allocation8 + $0x24] sm:$0xf]
    %v943 = vld [vmem:[#allocation8 + $0x28] sm:$0xf]
    %v944 = vld [vmem:[#allocation8 + $0x2c] sm:$0xf]
    %v945 = vld [vmem:[#allocation8 + $0x30] sm:$0xf]
    %v946 = vld [vmem:[#allocation8 + $0x34] sm:$0xf]
    %v947 = vld [vmem:[#allocation8 + $0x38] sm:$0xf]
    %v948 = vld [vmem:[#allocation8 + $0x3c] sm:$0xf]
    %v949 = vld [vmem:[%s6] sm:$0x1]
    %v950 = vpack.c.bf16 %v932, %v932
    %v952 = vlaneseq
    %v953 = vshrl.u32 %v952, 7
    %v954 = vsub.s32 0, %v953
    %v955 = vrot.slane %v949, %v954
    %v973 = vunpack.c.l.b16 %v933
    %v974 = vunpack.c.l.b16 %v934
    %v975 = vunpack.c.l.b16 %v935
    %v976 = vunpack.c.l.b16 %v936
    %v977 = vunpack.c.l.b16 %v937
    %v978 = vunpack.c.l.b16 %v938
    %v979 = vunpack.c.l.b16 %v939
    %v980 = vunpack.c.l.b16 %v940
    %v981 = vunpack.c.l.b16 %v941
    %v982 = vunpack.c.l.b16 %v942
    %v983 = vunpack.c.l.b16 %v943
    %v984 = vunpack.c.l.b16 %v944
    %v985 = vunpack.c.l.b16 %v945
    %v986 = vunpack.c.l.b16 %v946
    %v987 = vunpack.c.l.b16 %v947
    %v988 = vunpack.c.l.b16 %v948
    %v989 = vpack.c.b16 %v974, %v973
    %v990 = vpack.c.b16 %v976, %v975
    %v991 = vpack.c.b16 %v978, %v977
    %v992 = vpack.c.b16 %v980, %v979
    %v993 = vpack.c.b16 %v982, %v981
    %v994 = vpack.c.b16 %v984, %v983
    %v995 = vpack.c.b16 %v986, %v985
    %v996 = vpack.c.b16 %v988, %v987
    %1005 = vmatprep.subr.bf16.mxu0 0
    %1006 = vmatpush1.bf16.msra.mxu0 %v989
    %1007 = vmatprep.subr.bf16.mxu0 0
    %1008 = vmatpush1.bf16.msra.mxu0 %v990
    %1009 = vmatprep.subr.bf16.mxu0 0
    %1010 = vmatpush1.bf16.msra.mxu0 %v991
    %1011 = vmatprep.subr.bf16.mxu0 0
    %1012 = vmatpush1.bf16.msra.mxu0 %v992
    %1013 = vmatprep.subr.bf16.mxu0 0
    %1014 = vmatpush1.bf16.msra.mxu0 %v993
    %1015 = vmatprep.subr.bf16.mxu0 0
    %1016 = vmatpush1.bf16.msra.mxu0 %v994
    %1017 = vmatprep.subr.bf16.mxu0 0
    %1018 = vmatpush1.bf16.msra.mxu0 %v995
    %1019 = vmatprep.subr.bf16.mxu0 0
    %1020 = vmatpush1.bf16.msra.mxu0 %v996
    %1021 = vmatprep.subr.bf16.mxu0 0
    %1022 = vmatpush1.bf16.msra.mxu0 0
    %1023 = vmatprep.subr.bf16.mxu0 0
    %1024 = vmatpush1.bf16.msra.mxu0 0
    %1025 = vmatprep.subr.bf16.mxu0 0
    %1026 = vmatpush1.bf16.msra.mxu0 0
    %1027 = vmatprep.subr.bf16.mxu0 0
    %1028 = vmatpush1.bf16.msra.mxu0 0
    %1029 = vmatprep.subr.bf16.mxu0 0
    %1030 = vmatpush1.bf16.msra.mxu0 0
    %1031 = vmatprep.subr.bf16.mxu0 0
    %1032 = vmatpush1.bf16.msra.mxu0 0
    %1033 = vmatprep.subr.bf16.mxu0 0
    %1034 = vmatpush1.bf16.msra.mxu0 0
    %1035 = vmatprep.subr.bf16.mxu0 0
    %1036 = vmatpush1.bf16.msra.mxu0 0
    %1037 = vmatprep.mubr.bf16.mxu0 0
    %1038 = vmatmul.mubr.bf16.gmra.mrb[0].mxu0 %v950
    %v1039 = vpop.f32.mrb[0].mxu0
    %v1040 = vadd.f32 %v955, %v1039
    %v1041 = vpop.f32.mrb[0].mxu0
    %v1042 = vpop.f32.mrb[0].mxu0
    %v1043 = vpop.f32.mrb[0].mxu0
    %1044 = vdwg.mxu0
    %1045 = vst [vmem:[#allocation10] sm:$0x3] %v1040
    // Predicated region
    $region46: #{tpu_custom_call.1} parent=1 // pred_check
      _
    $region47: #{tpu_custom_call.1} parent=1 // pred_check_branch
      %1047 = sbr.rel (0) target = $region49
    $region48: #{tpu_custom_call.1} parent=1 // pred_region
      %s1049 = ssub.s32 32, 32
      %1050 = vsyncadd [#allocation4], %s1049
      %s1052 = sshll.u32 [#allocation10], 4
      %s1053 = int_to_ptr.vmem [resolvable:$true] %s1052
      %1055 = dma.vmem_to_hbm [thread:$0]  %s1053, 32, %s7, [#allocation4]
    $region49: #{tpu_custom_call.1} parent=1 // pred_fallthru
      _
    // Predicated region
    $region50: #{tpu_custom_call.1} parent=1 // pred_check
      _
    $region51: #{tpu_custom_call.1} parent=1 // pred_check_branch
      %1057 = sbr.rel (0) target = $region53
    $region52: #{tpu_custom_call.1} parent=1 // pred_region
      %1058 = dma.done [#allocation4], 32
    $region53: #{tpu_custom_call.1} parent=1 // pred_fallthru
      _
    %1059 = vsyncpa [#allocation3], 1
    %1060 = vsyncpa [#allocation6], 1
    %1061 = vsyncpa [#allocation9], 1
    %1062 = vsyncpa [#allocation4], 1

</llo_original>
